<compile_context>
chip_gen: v5e
topology: v5e:2x2
jax: 0.10.0
libtpu: 0.0.40
codegen_flags: <defaults>
</compile_context>

<pallas_src>
import functools

import jax
import jax.numpy as jnp
from jax.experimental import pallas as pl
from jax.experimental.pallas import tpu as pltpu

IN_FEATURES = 17
OUT_FEATURES = 1
TB_MAX = 2048  # batch-tile width (lanes); multiple of 128, comfortably in VMEM


def _round_up(n, m):
    return ((n + m - 1) // m) * m


def logistic_regression_kernel(xt_ref, w_ref, b_ref, o_ref):
    # xt_ref: [17, TB]  (features on sublanes, batch on lanes)
    # w_ref : [17, 1]
    # b_ref : [1, 1]
    # o_ref : [1, TB]   (lane-dense output)
    xt = xt_ref[...]                                   # f32 [17, TB]
    w = w_ref[...]                                     # f32 [17, 1]
    b = b_ref[...]                                     # f32 [1, 1]
    # VPU broadcast-multiply + XLU sublane reduce (no MXU for K=17, N=1).
    logits = jnp.sum(xt * w, axis=0, keepdims=True) + b  # [1, TB]
    o_ref[...] = jax.nn.sigmoid(logits)


@functools.partial(jax.jit, static_argnames=())
def logistic_regression(x, w, b):
    """x: [B, 17] f32, w: [17, 1] f32, b: [1, 1] f32 -> [B, 1] f32."""
    B = x.shape[0]

    # Lane-dense layout: batch on the last (lane) axis.
    xt = x.T  # [17, B]

    # Pad batch so each tile is a multiple of 128 lanes and tb divides Bp.
    Bp = _round_up(B, 128)
    if Bp <= TB_MAX:
        tb = Bp
    else:
        tb = TB_MAX
        Bp = _round_up(Bp, tb)
    if Bp != B:
        xt = jnp.pad(xt, ((0, 0), (0, Bp - B)))  # zero-pad -> sigmoid(b), discarded

    grid = (Bp // tb,)

    out = pl.pallas_call(
        logistic_regression_kernel,
        out_shape=jax.ShapeDtypeStruct((1, Bp), jnp.float32),
        grid_spec=pltpu.PrefetchScalarGridSpec(
            num_scalar_prefetch=0,
            grid=grid,
            in_specs=[
                # streamed batch tiles of x^T
                pl.BlockSpec((IN_FEATURES, tb), lambda i: (0, i)),
                # tiny constants: full-array blocks, same block every step
                pl.BlockSpec((IN_FEATURES, OUT_FEATURES), lambda i: (0, 0)),
                pl.BlockSpec((1, OUT_FEATURES), lambda i: (0, 0)),
            ],
            out_specs=pl.BlockSpec((1, tb), lambda i: (0, i)),
        ),
        compiler_params=pltpu.CompilerParams(
            dimension_semantics=("parallel",),
        ),
    )(xt, w, b)

    # Back to PyTorch's [B, 1] output layout.
    return out[0, :B].reshape(B, OUT_FEATURES)


def init_params(key):
    # Match nn.Linear default init: U(-1/sqrt(fan_in), 1/sqrt(fan_in)).
    kw, kb = jax.random.split(key)
    bound = 1.0 / (IN_FEATURES ** 0.5)
    # Weight stored as [in, out] (transpose of PyTorch's [out, in]).
    w = jax.random.uniform(kw, (IN_FEATURES, OUT_FEATURES), jnp.float32,
                           minval=-bound, maxval=bound)
    b = jax.random.uniform(kb, (1, OUT_FEATURES), jnp.float32,
                           minval=-bound, maxval=bound)
    return w, b


if __name__ == "__main__":
    key = jax.random.PRNGKey(0)
    kx, kp = jax.random.split(key)

    batch = 8
    x = jax.random.normal(kx, (batch, IN_FEATURES), jnp.float32)
    w, b = init_params(kp)

    out = logistic_regression(x, w, b)
    out = jax.block_until_ready(out)

    # Reference: same math as torch.sigmoid(linear(x)).
    ref = jax.nn.sigmoid(x @ w + b)
    assert out.shape == (batch, OUT_FEATURES)
    assert jnp.allclose(out, ref, atol=1e-5, rtol=1e-5)

    print("KERNEL_OK")
</pallas_src>

<mosaic_0001>
module attributes {stable_mosaic.version = 11 : i64} {
  func.func @logistic_regression_kernel(%arg0: i32, %arg1: memref<17x128xf32, #tpu.memory_space<vmem>>, %arg2: memref<17x1xf32, #tpu.memory_space<vmem>>, %arg3: memref<1x1xf32, #tpu.memory_space<vmem>>, %arg4: memref<1x128xf32, #tpu.memory_space<vmem>>) attributes {dimension_semantics = [#tpu.dimension_semantics<parallel>], iteration_bounds = array<i64: 1>, scalar_prefetch = 0 : i64, scratch_operands = 0 : i64, tpu.core_type = #tpu.core_type<tc>, window_params = [{transform_indices = @transform_0, window_bounds = array<i64: 17, 128>}, {pipeline_mode = #tpu.pipeline_mode<synchronous>, transform_indices = @transform_1, window_bounds = array<i64: 17, 1>}, {pipeline_mode = #tpu.pipeline_mode<synchronous>, transform_indices = @transform_2, window_bounds = array<i64: 1, 1>}, {transform_indices = @transform_3, window_bounds = array<i64: 1, 128>}]} {
    %c0 = arith.constant 0 : index
    %c0_0 = arith.constant 0 : index
    %0 = vector.load %arg1[%c0, %c0_0] : memref<17x128xf32, #tpu.memory_space<vmem>>, vector<17x128xf32>
    %c0_1 = arith.constant 0 : index
    %c0_2 = arith.constant 0 : index
    %1 = vector.load %arg2[%c0_1, %c0_2] : memref<17x1xf32, #tpu.memory_space<vmem>>, vector<17x1xf32>
    %c0_3 = arith.constant 0 : index
    %c0_4 = arith.constant 0 : index
    %2 = vector.load %arg3[%c0_3, %c0_4] : memref<1x1xf32, #tpu.memory_space<vmem>>, vector<1x1xf32>
    %3 = vector.broadcast %1 : vector<17x1xf32> to vector<17x128xf32>
    %4 = arith.mulf %0, %3 : vector<17x128xf32>
    %cst = arith.constant dense<0.000000e+00> : vector<128xf32>
    %5 = vector.multi_reduction <add>, %4, %cst [0] : vector<17x128xf32> to vector<128xf32>
    %6 = vector.shape_cast %5 : vector<128xf32> to vector<1x128xf32>
    %7 = vector.broadcast %2 : vector<1x1xf32> to vector<1x128xf32>
    %8 = arith.addf %6, %7 : vector<1x128xf32>
    %9 = arith.negf %8 : vector<1x128xf32>
    %10 = math.exp %9 : vector<1x128xf32>
    %cst_5 = arith.constant 1.000000e+00 : f32
    %11 = vector.broadcast %cst_5 : f32 to vector<1x128xf32>
    %12 = arith.addf %11, %10 : vector<1x128xf32>
    %13 = arith.divf %11, %12 : vector<1x128xf32>
    %c0_6 = arith.constant 0 : index
    %c0_7 = arith.constant 0 : index
    %14 = vector.load %arg4[%c0_6, %c0_7] : memref<1x128xf32, #tpu.memory_space<vmem>>, vector<1x128xf32>
    tpu.vector_store %arg4[%c0_6, %c0_7], %13 {strides = array<i32>} : memref<1x128xf32, #tpu.memory_space<vmem>>, vector<1x128xf32>,
    return
  }
  func.func @transform_0(%arg0: i32) -> (i32, i32) {
    %c0_i32 = arith.constant 0 : i32
    %c0_i32_0 = arith.constant 0 : i32
    return %c0_i32, %arg0 : i32, i32
  }
  func.func @transform_1(%arg0: i32) -> (i32, i32) {
    %c0_i32 = arith.constant 0 : i32
    %c0_i32_0 = arith.constant 0 : i32
    %c0_i32_1 = arith.constant 0 : i32
    return %c0_i32, %c0_i32_0 : i32, i32
  }
  func.func @transform_2(%arg0: i32) -> (i32, i32) {
    %c0_i32 = arith.constant 0 : i32
    %c0_i32_0 = arith.constant 0 : i32
    %c0_i32_1 = arith.constant 0 : i32
    return %c0_i32, %c0_i32_0 : i32, i32
  }
  func.func @transform_3(%arg0: i32) -> (i32, i32) {
    %c0_i32 = arith.constant 0 : i32
    %c0_i32_0 = arith.constant 0 : i32
    return %c0_i32, %arg0 : i32, i32
  }
}

</mosaic_0001>

<llo_original>
// kernel: logistic_regression.1
$region0: #{logistic_regression.1}
  #allocation0 [shape = 'u32[]', space=smem, size = 0x4, offset = 0x4, fixed_abs, tag = 'smem constant byte address 0x4 - core index']
  #allocation1 [shape = 'u32[72,128]{1,0:T(1,128)}', space=vmem, size = 0x9000, scoped, tag = 'internal scratch']
  #allocation2 [shape = 'f32[1,1]{1,0:T(1,128)S(1)}', space=vmem, size = 0x200, scoped, tag = 'scoped memory for logistic_regression.1']
  %s0 = inlined_call_operand.vmem [shape: f32[17,128], index: 0, kind: input, shape index: {}]
  %s1 = inlined_call_operand.vmem [shape: f32[17,1], index: 1, kind: input, shape index: {}]
  %s2 = inlined_call_operand.<no memory space> [shape: f32[1,1], index: 2, kind: input, shape index: {}]
  %s3 = inlined_call_operand.vmem [shape: f32[1,128], index: 3, kind: output, shape index: {}]
  %s4 = sld [smem:[#allocation0]]
  $region22: #{logistic_regression.1} parent=0
    _
  %s6 = ssub.s32 1, %s4
  %s7 = scalar_select 0, %s6, %s4
  %v8 = vstv %s2
  %9 = vst [vmem:[#allocation2] sm:$0x1] %v8
  // Predicated region
  $region2: #{logistic_regression.1} parent=0 // pred_check
    _
  $region3: #{logistic_regression.1} parent=0 // pred_check_branch
    %11 = sbr.rel (0) target = $region5
  $region4: #{logistic_regression.1} parent=0 // pred_region
    _
  $region5: #{logistic_regression.1} parent=0 // pred_fallthru
    _
  // Predicated region
  $region6: #{logistic_regression.1} parent=0 // pred_check
    _
  $region7: #{logistic_regression.1} parent=0 // pred_check_branch
    %13 = sbr.rel (0) target = $region9
  $region8: #{logistic_regression.1} parent=0 // pred_region
    _
  $region9: #{logistic_regression.1} parent=0 // pred_fallthru
    _
  // Predicated region
  $region10: #{logistic_regression.1} parent=0 // pred_check
    _
  $region11: #{logistic_regression.1} parent=0 // pred_check_branch
    %15 = sbr.rel (0) target = $region13
  $region12: #{logistic_regression.1} parent=0 // pred_region
    _
  $region13: #{logistic_regression.1} parent=0 // pred_fallthru
    _
  %v16 = vld [vmem:[%s0] sm:$0xff]
  %v17 = vld [vmem:[%s0 + $0x8] sm:$0xff]
  %v18 = vld [vmem:[%s0 + $0x10] sm:$0x1]
  %v19 = vld [vmem:[%s1] sm:$0xff]
  %v20 = vld [vmem:[%s1 + $0x8] sm:$0xff]
  %v21 = vld [vmem:[%s1 + $0x10] sm:$0x1]
  %v22 = vld [vmem:[#allocation2] sm:$0x1]
  %24 = vset.pattern.permute.xlu0 0
  %25 = vperm.xlu0 %24, %v19
  %v26 = vpop.permute.xlu0 %25
  %29 = vset.pattern.permute.xlu0 0
  %30 = vperm.xlu0 %29, %v20
  %v31 = vpop.permute.xlu0 %30
  %34 = vset.pattern.permute.xlu0 0
  %35 = vperm.xlu0 %34, %v21
  %v36 = vpop.permute.xlu0 %35
  %v38 = vmul.f32 %v16, %v26
  %v39 = vmul.f32 %v17, %v31
  %v40 = vmul.f32 %v18, %v36
  %v41 = vadd.f32 %v38, %v39
  %vm42 = vcmask 1040384
  %v43 = vsel %vm42, %v40, 0.0
  %v44 = vadd.f32 %v41, %v43
  %v45 = vrot.slane %v44, 4
  %v46 = vadd.f32 %v44, %v45
  %v47 = vrot.slane %v46, 2
  %v48 = vadd.f32 %v46, %v47
  %v49 = vrot.slane %v48, 1
  %v50 = vadd.f32 %v48, %v49
  %52 = vset.pattern.permute.xlu0 0
  %53 = vperm.xlu0 %52, %v22
  %v54 = vpop.permute.xlu0 %53
  %v56 = vperm.slane %v54, 0
  %v57 = vadd.f32 %v50, %v56
  %v58 = vxor.u32 %v57, 2147483648
  %v59 = vmul.f32 %v58, 1.442695
  %v60 = vpow.pop %v59
  %v61 = vadd.f32 %v60, 1.0
  %v62 = vrcp.pop %v61
  %v63 = vmul.f32 %v61, %v62
  %v64 = vsub.f32 1.0, %v63
  %v65 = vmul.f32 %v62, %v64
  %v66 = vadd.f32 %v62, %v65
  %vm67 = vweird.f32 %v61
  %vm68 = vweird.f32 %v62
  %vm69 = vmor %vm67, %vm68
  %v70 = vsel %vm69, %v62, %v66
  %v71 = vand.u32 2147483647, %v61
  %vm72 = vcmp.eq.f32.partialorder %v71, 8.507059e+37
  %v73 = vand.u32 %v61, 2147483648
  %v74 = vor.u32 1.1754944e-38, %v73
  %v75 = vsel %vm72, %v74, %v70
  %v76 = vmul.f32 1.0, %v75
  %77 = vst [vmem:[%s3] sm:$0x1] %v76
  // Predicated region
  $region14: #{logistic_regression.1} parent=0 // pred_check
    _
  $region15: #{logistic_regression.1} parent=0 // pred_check_branch
    %79 = sbr.rel (0) target = $region17
  $region16: #{logistic_regression.1} parent=0 // pred_region
    _
  $region17: #{logistic_regression.1} parent=0 // pred_fallthru
    _
  // Predicated region
  $region18: #{logistic_regression.1} parent=0 // pred_check
    _
  $region19: #{logistic_regression.1} parent=0 // pred_check_branch
    %81 = sbr.rel (0) target = $region21
  $region20: #{logistic_regression.1} parent=0 // pred_region
    _
  $region21: #{logistic_regression.1} parent=0 // pred_fallthru
    _

</llo_original>
